<compile_context>
chip_gen: v5e
topology: v5e:2x2
jax: 0.10.0
libtpu: 0.0.40
codegen_flags: <defaults>
</compile_context>

<pallas_src>
import functools

import jax
import jax.numpy as jnp
from jax.experimental import pallas as pl
from jax.experimental.pallas import tpu as pltpu

# ---------------------------------------------------------------------------
# Padded layer geometry (lane aligned).  Real sizes: in=5, 75, 150, 50, out=3.
# The 150-wide hidden layer is split into two 128-wide halves so every weight
# block is exactly 128 lanes wide (no dead upper slab columns).
# ---------------------------------------------------------------------------
H1 = 128          # fc1 out (75 real)
H2A = 128         # fc2 out, first half  (128 real)
H2B = 128         # fc2 out, second half (22 real, rest zero)
H3 = 128          # fc3 out (50 real)
D_OUT = 128       # fc4 out (nb_action real)

# bf16 weight slab: five stacked (128, 128) blocks -> (640, 128), ~160 KiB.
ROW_W2A, ROW_W2B, ROW_W3A, ROW_W3B, ROW_W4 = 0, 128, 256, 384, 512
SLAB_ROWS, SLAB_COLS = 640, 128

PARAM_DT = jnp.bfloat16           # MXU operand dtype (fc2..fc4)


# ---------------------------------------------------------------------------
# Kernel: full 4-layer MLP on one (BM, input_size) activation tile.
# ---------------------------------------------------------------------------
def mlp_kernel(x_ref, w_ref, p_ref, o_ref):
    """x_ref: (BM, F) f32 raw states (no padding / no cast done by wrapper)
    w_ref: (640, 128) bf16 packed fc2/fc3/fc4 weights (VMEM resident)
    p_ref: (16, 128)  f32 fc1 weight rows + the five bias rows
    o_ref: (BM, 128)  bf16 lane-dense Q output (cols >= nb_action are padding)
    """
    f32 = jnp.float32
    x = x_ref[...]                                   # (BM, F) f32
    bm, feat = x.shape
    brow = -(-feat // 8) * 8                         # first bias row in p_ref

    # fc1: contraction dim is tiny (F == 5) -> rank-1 VPU updates in full f32.
    w1 = p_ref[0:feat, :]                            # (F, H1) f32
    h1 = jnp.broadcast_to(p_ref[brow:brow + 1, :], (bm, H1))      # + b1
    for j in range(feat):                            # static unroll (F small)
        h1 = h1 + x[:, j:j + 1] * w1[j:j + 1, :]
    h1 = jnp.maximum(h1, 0.0).astype(PARAM_DT)       # (BM, H1) bf16

    # fc2 (MXU): 150-wide output split into two 128-lane halves.
    b2a = p_ref[brow + 1:brow + 2, :]
    b2b = p_ref[brow + 2:brow + 3, :]
    h2a = jnp.maximum(
        jnp.dot(h1, w_ref[ROW_W2A:ROW_W2A + H1, :],
                preferred_element_type=f32) + b2a, 0.0).astype(PARAM_DT)
    h2b = jnp.maximum(
        jnp.dot(h1, w_ref[ROW_W2B:ROW_W2B + H1, :],
                preferred_element_type=f32) + b2b, 0.0).astype(PARAM_DT)

    # fc3 (MXU): split contraction over the two H2 halves (== relu(h2) @ W3).
    b3 = p_ref[brow + 3:brow + 4, :]
    h3 = jnp.maximum(
        jnp.dot(h2a, w_ref[ROW_W3A:ROW_W3A + H2A, :], preferred_element_type=f32)
        + jnp.dot(h2b, w_ref[ROW_W3B:ROW_W3B + H2B, :], preferred_element_type=f32)
        + b3, 0.0).astype(PARAM_DT)

    # fc4 (MXU), linear head.
    b4 = p_ref[brow + 4:brow + 5, :]
    q = jnp.dot(h3, w_ref[ROW_W4:ROW_W4 + H3, :], preferred_element_type=f32) + b4
    o_ref[...] = q.astype(o_ref.dtype)               # lane-dense bf16 store


# ---------------------------------------------------------------------------
# Wrapper.
# ---------------------------------------------------------------------------
def _choose_block_m(batch):
    """Batch rows per grid step: single step for tiny batches; for large
    replay batches grow the tile (amortize ~0.35us/step overhead) while
    keeping >= 2 grid steps so ("parallel",) can shard across v7x's 2 TCs."""
    if batch <= 128:
        return max(8, -(-batch // 8) * 8)
    bm = 128
    for cand in (256, 512):
        if batch >= 2 * cand:
            bm = cand
    return bm


@functools.partial(jax.jit, static_argnums=(3,))
def network_forward(state, w_slab, p_small, nb_action):
    """state: (batch, input_size) f32 -> (batch, nb_action) f32 Q-values.

    DQN tip: stack s and s' (or online/target) batches along axis 0 into one
    call — the kernel is launch/DMA bound at this model size.
    """
    batch, in_feat = state.shape
    w1_rows = -(-in_feat // 8) * 8
    assert nb_action <= D_OUT and w1_rows + 5 <= p_small.shape[0]

    bm = _choose_block_m(batch)
    padded_batch = -(-batch // bm) * bm
    if padded_batch != batch:                        # rows only; no lane pad,
        state = jnp.pad(state, ((0, padded_batch - batch), (0, 0)))  # no cast

    flops = 2 * padded_batch * (in_feat * H1 + H1 * (H2A + H2B)
                                + (H2A + H2B) * H3 + H3 * D_OUT)
    bytes_accessed = (padded_batch * in_feat * 4 + w_slab.size * 2
                      + p_small.size * 4 + padded_batch * D_OUT * 2)

    q_padded = pl.pallas_call(
        mlp_kernel,
        out_shape=jax.ShapeDtypeStruct((padded_batch, D_OUT), PARAM_DT),
        grid=(padded_batch // bm,),
        in_specs=[
            # raw f32 states: last block dim equals the full array dim.
            pl.BlockSpec((bm, in_feat), lambda i: (i, 0)),
            # constant block index -> DMA'd once, stays VMEM resident;
            # Buffered(1) documents "resident weights" (no 2nd pipeline buf).
            pl.BlockSpec((SLAB_ROWS, SLAB_COLS), lambda i: (0, 0),
                         pipeline_mode=pl.Buffered(1)),
            pl.BlockSpec(p_small.shape, lambda i: (0, 0),
                         pipeline_mode=pl.Buffered(1)),
        ],
        out_specs=pl.BlockSpec((bm, D_OUT), lambda i: (i, 0)),
        compiler_params=pltpu.CompilerParams(
            dimension_semantics=("parallel",)),
        cost_estimate=pl.CostEstimate(flops=flops, transcendentals=0,
                                      bytes_accessed=bytes_accessed),
    )(state, w_slab, p_small)

    return q_padded[:batch, :nb_action].astype(jnp.float32)


# ---------------------------------------------------------------------------
# Parameter init (PyTorch-like uniform fan-in) and packing.
# ---------------------------------------------------------------------------
def init_params(key, input_size, nb_action):
    sizes = [(input_size, 75), (75, 150), (150, 50), (50, nb_action)]
    params = {}
    for i, (fan_in, fan_out) in enumerate(sizes, start=1):
        key, kw, kb = jax.random.split(key, 3)
        bound = 1.0 / jnp.sqrt(jnp.float32(fan_in))
        # stored as (in, out) == transpose of PyTorch's (out, in) weight
        params[f"w{i}"] = jax.random.uniform(
            kw, (fan_in, fan_out), jnp.float32, -bound, bound)
        params[f"b{i}"] = jax.random.uniform(
            kb, (fan_out,), jnp.float32, -bound, bound)
    return params


def pack_params(params, input_size, nb_action):
    """Zero-pad and pack the parameters for the kernel.

    Zero padding preserves the forward pass exactly: padded weight rows/cols
    AND padded bias lanes are zero, so padded lanes stay exactly 0 after ReLU.
    """
    w2, w3 = params["w2"], params["w3"]
    slab = jnp.zeros((SLAB_ROWS, SLAB_COLS), jnp.float32)
    slab = slab.at[ROW_W2A:ROW_W2A + 75, :].set(w2[:, :128])
    slab = slab.at[ROW_W2B:ROW_W2B + 75, :150 - 128].set(w2[:, 128:])
    slab = slab.at[ROW_W3A:ROW_W3A + 128, :50].set(w3[:128, :])
    slab = slab.at[ROW_W3B:ROW_W3B + (150 - 128), :50].set(w3[128:, :])
    slab = slab.at[ROW_W4:ROW_W4 + 50, :nb_action].set(params["w4"])
    w_slab = slab.astype(PARAM_DT)

    w1_rows = -(-input_size // 8) * 8
    small_rows = -(-(w1_rows + 5) // 8) * 8
    small = jnp.zeros((small_rows, SLAB_COLS), jnp.float32)
    small = small.at[:input_size, :75].set(params["w1"])
    small = small.at[w1_rows + 0, :75].set(params["b1"])
    small = small.at[w1_rows + 1, :].set(params["b2"][:128])
    small = small.at[w1_rows + 2, :150 - 128].set(params["b2"][128:])
    small = small.at[w1_rows + 3, :50].set(params["b3"])
    small = small.at[w1_rows + 4, :nb_action].set(params["b4"])
    return w_slab, small


# ---------------------------------------------------------------------------
# References for correctness checking.
# ---------------------------------------------------------------------------
def reference_forward_f32(state, params):
    """Plain-JAX f32 reference with the original (unpadded) parameters."""
    x = jnp.maximum(state @ params["w1"] + params["b1"], 0.0)
    x = jnp.maximum(x @ params["w2"] + params["b2"], 0.0)
    x = jnp.maximum(x @ params["w3"] + params["b3"], 0.0)
    return x @ params["w4"] + params["b4"]


def reference_forward_mixed(state, params):
    """Mirrors the kernel's precision: fc1 fully f32, fc2..4 bf16 operands
    with f32 accumulation + f32 biases, bf16 output store."""
    f32, bf16 = jnp.float32, jnp.bfloat16
    h1 = jnp.maximum(state @ params["w1"] + params["b1"], 0.0).astype(bf16)
    h2 = jnp.maximum(jnp.dot(h1, params["w2"].astype(bf16),
                             preferred_element_type=f32) + params["b2"],
                     0.0).astype(bf16)
    h3 = jnp.maximum(jnp.dot(h2, params["w3"].astype(bf16),
                             preferred_element_type=f32) + params["b3"],
                     0.0).astype(bf16)
    q = jnp.dot(h3, params["w4"].astype(bf16),
                preferred_element_type=f32) + params["b4"]
    return q.astype(bf16).astype(f32)


if __name__ == "__main__":
    # Original app: input_size=5 (3 sensors + orientation, -orientation),
    # nb_action=3.
    input_size, nb_action = 5, 3

    key = jax.random.PRNGKey(0)
    key, kx1, kx2 = jax.random.split(key, 3)
    params = init_params(key, input_size, nb_action)
    w_slab, p_small = pack_params(params, input_size, nb_action)

    # Replay-batch sized call: grid has 2 parallel steps (both v7x TCs busy).
    batch = 256
    state = jax.random.normal(kx1, (batch, input_size), jnp.float32)
    q = jax.block_until_ready(network_forward(state, w_slab, p_small, nb_action))
    assert q.shape == (batch, nb_action)
    assert jnp.allclose(q, reference_forward_mixed(state, params),
                        atol=2e-2, rtol=2e-2)
    assert jnp.allclose(q, reference_forward_f32(state, params),
                        atol=5e-2, rtol=5e-2)

    # Tiny act()-style call (odd batch exercises the row-pad path).
    state_small = jax.random.normal(kx2, (2, input_size), jnp.float32)
    q_small = jax.block_until_ready(
        network_forward(state_small, w_slab, p_small, nb_action))
    assert q_small.shape == (2, nb_action)
    assert jnp.allclose(q_small, reference_forward_f32(state_small, params),
                        atol=5e-2, rtol=5e-2)

    print("KERNEL_OK")
</pallas_src>

<mosaic_0001>
module attributes {stable_mosaic.version = 11 : i64} {
  func.func @mlp_kernel(%arg0: i32, %arg1: memref<128x5xf32, #tpu.memory_space<vmem>>, %arg2: memref<640x128xbf16, #tpu.memory_space<vmem>>, %arg3: memref<16x128xf32, #tpu.memory_space<vmem>>, %arg4: memref<128x128xbf16, #tpu.memory_space<vmem>>) attributes {dimension_semantics = [#tpu.dimension_semantics<parallel>], iteration_bounds = array<i64: 2>, scalar_prefetch = 0 : i64, scratch_operands = 0 : i64, tpu.core_type = #tpu.core_type<tc>, window_params = [{transform_indices = @transform_0, window_bounds = array<i64: 128, 5>}, {pipeline_mode = #tpu.pipeline_mode<synchronous>, transform_indices = @transform_1, window_bounds = array<i64: 640, 128>}, {pipeline_mode = #tpu.pipeline_mode<synchronous>, transform_indices = @transform_2, window_bounds = array<i64: 16, 128>}, {transform_indices = @transform_3, window_bounds = array<i64: 128, 128>}]} {
    %c0 = arith.constant 0 : index
    %c0_0 = arith.constant 0 : index
    %0 = vector.load %arg1[%c0, %c0_0] : memref<128x5xf32, #tpu.memory_space<vmem>>, vector<128x5xf32>
    %c0_1 = arith.constant 0 : index
    %c0_2 = arith.constant 0 : index
    %1 = vector.load %arg3[%c0_1, %c0_2] : memref<16x128xf32, #tpu.memory_space<vmem>>, vector<5x128xf32>
    %c8 = arith.constant 8 : index
    %c0_3 = arith.constant 0 : index
    %2 = vector.load %arg3[%c8, %c0_3] : memref<16x128xf32, #tpu.memory_space<vmem>>, vector<1x128xf32>
    %3 = vector.shape_cast %2 : vector<1x128xf32> to vector<1x128xf32>
    %4 = vector.broadcast %3 : vector<1x128xf32> to vector<128x128xf32>
    %5 = vector.extract_strided_slice %0 {offsets = [0, 0], sizes = [128, 1], strides = [1, 1]} : vector<128x5xf32> to vector<128x1xf32>
    %6 = vector.extract_strided_slice %1 {offsets = [0, 0], sizes = [1, 128], strides = [1, 1]} : vector<5x128xf32> to vector<1x128xf32>
    %7 = vector.broadcast %5 : vector<128x1xf32> to vector<128x128xf32>
    %8 = vector.broadcast %6 : vector<1x128xf32> to vector<128x128xf32>
    %9 = arith.mulf %7, %8 : vector<128x128xf32>
    %10 = arith.addf %4, %9 : vector<128x128xf32>
    %11 = vector.extract_strided_slice %0 {offsets = [0, 1], sizes = [128, 1], strides = [1, 1]} : vector<128x5xf32> to vector<128x1xf32>
    %12 = vector.extract_strided_slice %1 {offsets = [1, 0], sizes = [1, 128], strides = [1, 1]} : vector<5x128xf32> to vector<1x128xf32>
    %13 = vector.broadcast %11 : vector<128x1xf32> to vector<128x128xf32>
    %14 = vector.broadcast %12 : vector<1x128xf32> to vector<128x128xf32>
    %15 = arith.mulf %13, %14 : vector<128x128xf32>
    %16 = arith.addf %10, %15 : vector<128x128xf32>
    %17 = vector.extract_strided_slice %0 {offsets = [0, 2], sizes = [128, 1], strides = [1, 1]} : vector<128x5xf32> to vector<128x1xf32>
    %18 = vector.extract_strided_slice %1 {offsets = [2, 0], sizes = [1, 128], strides = [1, 1]} : vector<5x128xf32> to vector<1x128xf32>
    %19 = vector.broadcast %17 : vector<128x1xf32> to vector<128x128xf32>
    %20 = vector.broadcast %18 : vector<1x128xf32> to vector<128x128xf32>
    %21 = arith.mulf %19, %20 : vector<128x128xf32>
    %22 = arith.addf %16, %21 : vector<128x128xf32>
    %23 = vector.extract_strided_slice %0 {offsets = [0, 3], sizes = [128, 1], strides = [1, 1]} : vector<128x5xf32> to vector<128x1xf32>
    %24 = vector.extract_strided_slice %1 {offsets = [3, 0], sizes = [1, 128], strides = [1, 1]} : vector<5x128xf32> to vector<1x128xf32>
    %25 = vector.broadcast %23 : vector<128x1xf32> to vector<128x128xf32>
    %26 = vector.broadcast %24 : vector<1x128xf32> to vector<128x128xf32>
    %27 = arith.mulf %25, %26 : vector<128x128xf32>
    %28 = arith.addf %22, %27 : vector<128x128xf32>
    %29 = vector.extract_strided_slice %0 {offsets = [0, 4], sizes = [128, 1], strides = [1, 1]} : vector<128x5xf32> to vector<128x1xf32>
    %30 = vector.extract_strided_slice %1 {offsets = [4, 0], sizes = [1, 128], strides = [1, 1]} : vector<5x128xf32> to vector<1x128xf32>
    %31 = vector.broadcast %29 : vector<128x1xf32> to vector<128x128xf32>
    %32 = vector.broadcast %30 : vector<1x128xf32> to vector<128x128xf32>
    %33 = arith.mulf %31, %32 : vector<128x128xf32>
    %34 = arith.addf %28, %33 : vector<128x128xf32>
    %cst = arith.constant 0.000000e+00 : f32
    %35 = vector.broadcast %cst : f32 to vector<128x128xf32>
    %36 = arith.maximumf %34, %35 : vector<128x128xf32>
    %37 = arith.truncf %36 : vector<128x128xf32> to vector<128x128xbf16>
    %c9 = arith.constant 9 : index
    %c0_4 = arith.constant 0 : index
    %38 = vector.load %arg3[%c9, %c0_4] : memref<16x128xf32, #tpu.memory_space<vmem>>, vector<1x128xf32>
    %c10 = arith.constant 10 : index
    %c0_5 = arith.constant 0 : index
    %39 = vector.load %arg3[%c10, %c0_5] : memref<16x128xf32, #tpu.memory_space<vmem>>, vector<1x128xf32>
    %c0_6 = arith.constant 0 : index
    %c0_7 = arith.constant 0 : index
    %40 = vector.load %arg2[%c0_6, %c0_7] : memref<640x128xbf16, #tpu.memory_space<vmem>>, vector<128x128xbf16>
    %cst_8 = arith.constant dense<0.000000e+00> : vector<128x128xf32>
    %41 = tpu.matmul %37, %40, %cst_8 {dimension_numbers = #tpu.dot_dimension_numbers<[1], [0], [0], [1], [0, 0, 1, 1], [], []>} : vector<128x128xbf16>, vector<128x128xbf16>, vector<128x128xf32> -> vector<128x128xf32>
    %42 = vector.broadcast %38 : vector<1x128xf32> to vector<128x128xf32>
    %43 = arith.addf %41, %42 : vector<128x128xf32>
    %cst_9 = arith.constant 0.000000e+00 : f32
    %44 = vector.broadcast %cst_9 : f32 to vector<128x128xf32>
    %45 = arith.maximumf %43, %44 : vector<128x128xf32>
    %46 = arith.truncf %45 : vector<128x128xf32> to vector<128x128xbf16>
    %c128 = arith.constant 128 : index
    %c0_10 = arith.constant 0 : index
    %47 = vector.load %arg2[%c128, %c0_10] : memref<640x128xbf16, #tpu.memory_space<vmem>>, vector<128x128xbf16>
    %cst_11 = arith.constant dense<0.000000e+00> : vector<128x128xf32>
    %48 = tpu.matmul %37, %47, %cst_11 {dimension_numbers = #tpu.dot_dimension_numbers<[1], [0], [0], [1], [0, 0, 1, 1], [], []>} : vector<128x128xbf16>, vector<128x128xbf16>, vector<128x128xf32> -> vector<128x128xf32>
    %49 = vector.broadcast %39 : vector<1x128xf32> to vector<128x128xf32>
    %50 = arith.addf %48, %49 : vector<128x128xf32>
    %cst_12 = arith.constant 0.000000e+00 : f32
    %51 = vector.broadcast %cst_12 : f32 to vector<128x128xf32>
    %52 = arith.maximumf %50, %51 : vector<128x128xf32>
    %53 = arith.truncf %52 : vector<128x128xf32> to vector<128x128xbf16>
    %c11 = arith.constant 11 : index
    %c0_13 = arith.constant 0 : index
    %54 = vector.load %arg3[%c11, %c0_13] : memref<16x128xf32, #tpu.memory_space<vmem>>, vector<1x128xf32>
    %c256 = arith.constant 256 : index
    %c0_14 = arith.constant 0 : index
    %55 = vector.load %arg2[%c256, %c0_14] : memref<640x128xbf16, #tpu.memory_space<vmem>>, vector<128x128xbf16>
    %cst_15 = arith.constant dense<0.000000e+00> : vector<128x128xf32>
    %56 = tpu.matmul %46, %55, %cst_15 {dimension_numbers = #tpu.dot_dimension_numbers<[1], [0], [0], [1], [0, 0, 1, 1], [], []>} : vector<128x128xbf16>, vector<128x128xbf16>, vector<128x128xf32> -> vector<128x128xf32>
    %c384 = arith.constant 384 : index
    %c0_16 = arith.constant 0 : index
    %57 = vector.load %arg2[%c384, %c0_16] : memref<640x128xbf16, #tpu.memory_space<vmem>>, vector<128x128xbf16>
    %cst_17 = arith.constant dense<0.000000e+00> : vector<128x128xf32>
    %58 = tpu.matmul %53, %57, %cst_17 {dimension_numbers = #tpu.dot_dimension_numbers<[1], [0], [0], [1], [0, 0, 1, 1], [], []>} : vector<128x128xbf16>, vector<128x128xbf16>, vector<128x128xf32> -> vector<128x128xf32>
    %59 = arith.addf %56, %58 : vector<128x128xf32>
    %60 = vector.broadcast %54 : vector<1x128xf32> to vector<128x128xf32>
    %61 = arith.addf %59, %60 : vector<128x128xf32>
    %cst_18 = arith.constant 0.000000e+00 : f32
    %62 = vector.broadcast %cst_18 : f32 to vector<128x128xf32>
    %63 = arith.maximumf %61, %62 : vector<128x128xf32>
    %64 = arith.truncf %63 : vector<128x128xf32> to vector<128x128xbf16>
    %c12 = arith.constant 12 : index
    %c0_19 = arith.constant 0 : index
    %65 = vector.load %arg3[%c12, %c0_19] : memref<16x128xf32, #tpu.memory_space<vmem>>, vector<1x128xf32>
    %c512 = arith.constant 512 : index
    %c0_20 = arith.constant 0 : index
    %66 = vector.load %arg2[%c512, %c0_20] : memref<640x128xbf16, #tpu.memory_space<vmem>>, vector<128x128xbf16>
    %cst_21 = arith.constant dense<0.000000e+00> : vector<128x128xf32>
    %67 = tpu.matmul %64, %66, %cst_21 {dimension_numbers = #tpu.dot_dimension_numbers<[1], [0], [0], [1], [0, 0, 1, 1], [], []>} : vector<128x128xbf16>, vector<128x128xbf16>, vector<128x128xf32> -> vector<128x128xf32>
    %68 = vector.broadcast %65 : vector<1x128xf32> to vector<128x128xf32>
    %69 = arith.addf %67, %68 : vector<128x128xf32>
    %70 = arith.truncf %69 : vector<128x128xf32> to vector<128x128xbf16>
    %c0_22 = arith.constant 0 : index
    %c0_23 = arith.constant 0 : index
    %71 = vector.load %arg4[%c0_22, %c0_23] : memref<128x128xbf16, #tpu.memory_space<vmem>>, vector<128x128xbf16>
    tpu.vector_store %arg4[%c0_22, %c0_23], %70 {strides = array<i32>} : memref<128x128xbf16, #tpu.memory_space<vmem>>, vector<128x128xbf16>,
    return
  }
  func.func @transform_0(%arg0: i32) -> (i32, i32) {
    %c0_i32 = arith.constant 0 : i32
    %c0_i32_0 = arith.constant 0 : i32
    return %arg0, %c0_i32 : i32, i32
  }
  func.func @transform_1(%arg0: i32) -> (i32, i32) {
    %c0_i32 = arith.constant 0 : i32
    %c0_i32_0 = arith.constant 0 : i32
    %c0_i32_1 = arith.constant 0 : i32
    return %c0_i32, %c0_i32_0 : i32, i32
  }
  func.func @transform_2(%arg0: i32) -> (i32, i32) {
    %c0_i32 = arith.constant 0 : i32
    %c0_i32_0 = arith.constant 0 : i32
    %c0_i32_1 = arith.constant 0 : i32
    return %c0_i32, %c0_i32_0 : i32, i32
  }
  func.func @transform_3(%arg0: i32) -> (i32, i32) {
    %c0_i32 = arith.constant 0 : i32
    %c0_i32_0 = arith.constant 0 : i32
    return %arg0, %c0_i32 : i32, i32
  }
}

</mosaic_0001>

<llo_original>
// kernel: network_forward.1
$region0: #{network_forward.1}
  #allocation0 [shape = 'u32[]', space=smem, size = 0x4, offset = 0x4, fixed_abs, tag = 'smem constant byte address 0x4 - core index']
  #allocation1 [shape = 'u32[72,128]{1,0:T(1,128)}', space=vmem, size = 0x9000, scoped, tag = 'internal scratch']
  %s0 = inlined_call_operand.vmem [shape: f32[256,5], index: 0, kind: input, shape index: {}]
  %s1 = inlined_call_operand.hbm [shape: bf16[640,128], index: 1, kind: input, shape index: {}]
  %s2 = inlined_call_operand.vmem [shape: f32[16,128], index: 2, kind: input, shape index: {}]
  %s3 = inlined_call_operand.vmem [shape: bf16[256,128], index: 3, kind: output, shape index: {}]
  %s4 = sld [smem:[#allocation0]]
  $region49: #{network_forward.1} parent=0
    _
  %s6 = ssub.s32 1, %s4
  %s7 = scalar_select 0, %s6, %s4
  $region1: #{network_forward.1} parent=0
    #allocation2 [shape = 'u8[163840]{0}', space=vmem, size = 0x28000, scoped, tag = 'input window, operand 1, single buffered']
    #allocation3 [shape = 's32[2]{0}', space=sflag, size = 0x8, scoped, tag = 'scoped memory for network_forward.1']
    %8 = vsyncpa [#allocation3], 0
    loop: start=0, step=1, limit=4
    $region2: #{network_forward.1} parent=1 // loop_pre_header
      _
    $region3: #{network_forward.1} parent=1 // loop_header
      %s10 = sphi 0, %s14
      %p11 = scmp.ge.s32.totalorder %s10, 4
      %s20 = sphi 0, %s22
      %s23 = sphi 0, %s20
      %s24 = sphi 0, %s23
      %s40 = sphi 0, %s24
      %s44 = sphi 0, %s44
      %s46 = sphi 0, %s44
      %s47 = sphi 0, %s46
      %s61 = sphi 0, %s47
      %s65 = sphi 0, %s65
      %s67 = sphi 0, %s65
      %s68 = sphi 0, %s67
      %s82 = sphi 0, %s68
      %s88 = sphi 0, %s90
      %s91 = sphi 0, %s88
      %s92 = sphi 0, %s91
      %s108 = sphi 0, %s92
    $region4: #{network_forward.1} parent=1 // loop_header_branch
      %13 = sbr.rel (%p11) target = $region8
    $region5: #{network_forward.1} parent=1 // loop_body
      %s15 = ssub.s32 %s10, 1
      %s16 = ssub.s32 %s10, 2
      %s17 = sadd.s32 %s10, 1
      %s18 = ssub.s32 %s10, %s17
      %p19 = scmp.eq.s32.totalorder %s18, 0
      %s21 = sadd.s32 %s20, 1
      %s22 = scalar_select %p19, %s20, %s21
      %p25 = pneg %p19
      %p26 = scmp.eq.s32.totalorder %s10, 1
      %p27 = por %p25, %p26
      %p28 = scmp.ne.s32.totalorder %s20, %s23
      %p29 = scmp.eq.s32.totalorder %s10, 0
      %p30 = por %p28, %p29
      %p31 = scmp.ne.s32.totalorder %s20, %s23
      %p32 = scmp.eq.s32.totalorder %s15, 1
      %p33 = por %p31, %p32
      %p34 = scmp.ne.s32.totalorder %s23, %s24
      %p35 = scmp.eq.s32.totalorder %s15, 0
      %p36 = por %p34, %p35
      %p37 = scmp.ne.s32.totalorder %s23, %s24
      %p38 = scmp.eq.s32.totalorder %s16, 1
      %p39 = por %p37, %p38
      %p41 = scmp.ne.s32.totalorder %s24, %s40
      %p42 = scmp.eq.s32.totalorder %s16, 0
      %p43 = por %p41, %p42
      %s45 = sadd.s32 %s44, 1
      %p48 = scmp.eq.s32.totalorder %s10, 1
      %p49 = scmp.ne.s32.totalorder %s44, %s46
      %p50 = scmp.eq.s32.totalorder %s10, 0
      %p51 = por %p49, %p50
      %p52 = scmp.ne.s32.totalorder %s44, %s46
      %p53 = scmp.eq.s32.totalorder %s15, 1
      %p54 = por %p52, %p53
      %p55 = scmp.ne.s32.totalorder %s46, %s47
      %p56 = scmp.eq.s32.totalorder %s15, 0
      %p57 = por %p55, %p56
      %p58 = scmp.ne.s32.totalorder %s46, %s47
      %p59 = scmp.eq.s32.totalorder %s16, 1
      %p60 = por %p58, %p59
      %p62 = scmp.ne.s32.totalorder %s47, %s61
      %p63 = scmp.eq.s32.totalorder %s16, 0
      %p64 = por %p62, %p63
      %s66 = sadd.s32 %s65, 1
      %p69 = scmp.eq.s32.totalorder %s10, 1
      %p70 = scmp.ne.s32.totalorder %s65, %s67
      %p71 = scmp.eq.s32.totalorder %s10, 0
      %p72 = por %p70, %p71
      %p73 = scmp.ne.s32.totalorder %s65, %s67
      %p74 = scmp.eq.s32.totalorder %s15, 1
      %p75 = por %p73, %p74
      %p76 = scmp.ne.s32.totalorder %s67, %s68
      %p77 = scmp.eq.s32.totalorder %s15, 0
      %p78 = por %p76, %p77
      %p79 = scmp.ne.s32.totalorder %s67, %s68
      %p80 = scmp.eq.s32.totalorder %s16, 1
      %p81 = por %p79, %p80
      %p83 = scmp.ne.s32.totalorder %s68, %s82
      %p84 = scmp.eq.s32.totalorder %s16, 0
      %p85 = por %p83, %p84
      %s86 = ssub.s32 %s10, %s17
      %p87 = scmp.eq.s32.totalorder %s86, 0
      %s89 = sadd.s32 %s88, 1
      %s90 = scalar_select %p87, %s88, %s89
      %p93 = pneg %p87
      %p94 = scmp.eq.s32.totalorder %s10, 1
      %p95 = por %p93, %p94
      %p96 = scmp.ne.s32.totalorder %s88, %s91
      %p97 = scmp.eq.s32.totalorder %s10, 0
      %p98 = por %p96, %p97
      %p99 = scmp.ne.s32.totalorder %s88, %s91
      %p100 = scmp.eq.s32.totalorder %s15, 1
      %p101 = por %p99, %p100
      %p102 = scmp.ne.s32.totalorder %s91, %s92
      %p103 = scmp.eq.s32.totalorder %s15, 0
      %p104 = por %p102, %p103
      %p105 = scmp.ne.s32.totalorder %s91, %s92
      %p106 = scmp.eq.s32.totalorder %s16, 1
      %p107 = por %p105, %p106
      %p109 = scmp.ne.s32.totalorder %s92, %s108
      %p110 = scmp.eq.s32.totalorder %s16, 0
      %p111 = por %p109, %p110
      %p112 = scmp.le.s32.totalorder 1, %s10
      %p113 = scmp.lt.s32.totalorder %s10, 3
      %p114 = pnand %p112, %p113
      %p115 = pneg %p114
      // Predicated region
      $region9: #{network_forward.1} parent=5 // pred_check
        _
      $region10: #{network_forward.1} parent=5 // pred_check_branch
        %117 = sbr.rel (%p114) target = $region12
      $region11: #{network_forward.1} parent=5 // pred_region
        %s118 = ssub.s32 %s10, 1
        // Predicated region
        $region13: #{network_forward.1} parent=11 // pred_check
          %p119 = pneg %p57
        $region14: #{network_forward.1} parent=11 // pred_check_branch
          %121 = sbr.rel (%p119) target = $region16
        $region15: #{network_forward.1} parent=11 // pred_region
          %123 = vsyncadd [#allocation3], 0
          %s124 = sshll.u32 %s1, 4
          %s125 = int_to_ptr.hbm [resolvable:$true] %s124
          %s126 = sshll.u32 [#allocation2], 4
          %s127 = int_to_ptr.vmem [resolvable:$true] %s126
          %132 = dma.hbm_to_vmem [thread:$0]  %s125, 5120, %s127, [#allocation3], 64, 64, 4
        $region16: #{network_forward.1} parent=11 // pred_fallthru
          _
        // Predicated region
        $region17: #{network_forward.1} parent=11 // pred_check
          %p133 = pneg %p78
        $region18: #{network_forward.1} parent=11 // pred_check_branch
          %135 = sbr.rel (%p133) target = $region20
        $region19: #{network_forward.1} parent=11 // pred_region
          _
        $region20: #{network_forward.1} parent=11 // pred_fallthru
          _
      $region12: #{network_forward.1} parent=5 // pred_fallthru
        _
      %p136 = scmp.lt.s32.totalorder %s10, 2
      // Predicated region
      $region21: #{network_forward.1} parent=5 // pred_check
        %p137 = pneg %p136
      $region22: #{network_forward.1} parent=5 // pred_check_branch
        %139 = sbr.rel (%p137) target = $region24
      $region23: #{network_forward.1} parent=5 // pred_region
        // Predicated region
        $region25: #{network_forward.1} parent=23 // pred_check
          %p140 = pneg %p30
        $region26: #{network_forward.1} parent=23 // pred_check_branch
          %142 = sbr.rel (%p140) target = $region28
        $region27: #{network_forward.1} parent=23 // pred_region
          %s143 = smul.u32 16, %s10
          %p144 = scmp.lt.s32.totalorder %s143, 31
          %s145 = scalar_select %p144, %s143, 31
          %s146 = smul.addr %s145, 8
          %s147 = scalar_lea.vmem %s0, %s146
          %s148 = smul.u32 16, %s10
        $region28: #{network_forward.1} parent=23 // pred_fallthru
          _
      $region24: #{network_forward.1} parent=5 // pred_fallthru
        _
      %p149 = scmp.le.s32.totalorder 1, %s10
      %p150 = scmp.lt.s32.totalorder %s10, 3
      %p151 = pnand %p149, %p150
      %p152 = pneg %p151
      // Predicated region
      $region29: #{network_forward.1} parent=5 // pred_check
        _
      $region30: #{network_forward.1} parent=5 // pred_check_branch
        %154 = sbr.rel (%p151) target = $region32
      $region31: #{network_forward.1} parent=5 // pred_region
        %s155 = ssub.s32 %s10, 1
        // Predicated region
        $region33: #{network_forward.1} parent=31 // pred_check
          %p156 = pneg %p57
        $region34: #{network_forward.1} parent=31 // pred_check_branch
          %158 = sbr.rel (%p156) target = $region36
        $region35: #{network_forward.1} parent=31 // pred_region
          %160 = dma.done [#allocation3], 5120
        $region36: #{network_forward.1} parent=31 // pred_fallthru
          _
        %s161 = smul.u32 16, %s15
        %p162 = scmp.lt.s32.totalorder %s161, 31
        %s163 = scalar_select %p162, %s161, 31
        %s164 = smul.addr %s163, 8
        %s165 = scalar_lea.vmem %s0, %s164
        %p166 = pneg %p36
        %p167 = pneg %p33
        %p168 = pneg %p57
        %p169 = pneg %p54
        %p170 = pneg %p78
        %p171 = pneg %p75
        %p172 = pneg %p104
        %p173 = pneg %p101
        %s174 = smul.u32 16, %s15
        %p175 = scmp.lt.s32.totalorder %s174, 31
        %s176 = scalar_select %p175, %s174, 31
        %s177 = smul.addr %s176, 4
        %s178 = scalar_lea.vmem %s3, %s177
        %s179 = smul.u32 16, %s15
        %p180 = scmp.lt.s32.totalorder %s179, 31
        %s181 = scalar_select %p180, %s179, 31
        %s182 = smul.addr %s181, 8
        %s183 = scalar_lea.vmem %s0, %s182
        %s184 = smul.u32 16, %s15
        %s185 = smul.u32 16, %s15
        %p186 = scmp.lt.s32.totalorder %s185, 31
        %s187 = scalar_select %p186, %s185, 31
        %s188 = smul.addr %s187, 4
        %s189 = scalar_lea.vmem %s3, %s188
        %s190 = smul.u32 16, %s15
        %v191 = vld [vmem:[%s183] sm:$0xff]
        %v192 = vld [vmem:[%s183 + $0x8] sm:$0xff]
        %v193 = vld [vmem:[%s183 + $0x10] sm:$0xff]
        %v194 = vld [vmem:[%s183 + $0x18] sm:$0xff]
        %v195 = vld [vmem:[%s183 + $0x20] sm:$0xff]
        %v196 = vld [vmem:[%s183 + $0x28] sm:$0xff]
        %v197 = vld [vmem:[%s183 + $0x30] sm:$0xff]
        %v198 = vld [vmem:[%s183 + $0x38] sm:$0xff]
        %v199 = vld [vmem:[%s183 + $0x40] sm:$0xff]
        %v200 = vld [vmem:[%s183 + $0x48] sm:$0xff]
        %v201 = vld [vmem:[%s183 + $0x50] sm:$0xff]
        %v202 = vld [vmem:[%s183 + $0x58] sm:$0xff]
        %v203 = vld [vmem:[%s183 + $0x60] sm:$0xff]
        %v204 = vld [vmem:[%s183 + $0x68] sm:$0xff]
        %v205 = vld [vmem:[%s183 + $0x70] sm:$0xff]
        %v206 = vld [vmem:[%s183 + $0x78] sm:$0xff]
        %v207 = vld [vmem:[%s2] sm:$0x1f]
        %v208 = vld [vmem:[%s2 + $0x8] sm:$0x1]
        %v209 = vperm.slane %v208, 0
        %211 = vset.pattern.permute.xlu0 0
        %212 = vperm.xlu0 %211, %v191
        %v213 = vpop.permute.xlu0 %212
        %216 = vset.pattern.permute.xlu0 0
        %217 = vperm.xlu0 %216, %v192
        %v218 = vpop.permute.xlu0 %217
        %221 = vset.pattern.permute.xlu0 0
        %222 = vperm.xlu0 %221, %v193
        %v223 = vpop.permute.xlu0 %222
        %226 = vset.pattern.permute.xlu0 0
        %227 = vperm.xlu0 %226, %v194
        %v228 = vpop.permute.xlu0 %227
        %231 = vset.pattern.permute.xlu0 0
        %232 = vperm.xlu0 %231, %v195
        %v233 = vpop.permute.xlu0 %232
        %236 = vset.pattern.permute.xlu0 0
        %237 = vperm.xlu0 %236, %v196
        %v238 = vpop.permute.xlu0 %237
        %241 = vset.pattern.permute.xlu0 0
        %242 = vperm.xlu0 %241, %v197
        %v243 = vpop.permute.xlu0 %242
        %246 = vset.pattern.permute.xlu0 0
        %247 = vperm.xlu0 %246, %v198
        %v248 = vpop.permute.xlu0 %247
        %251 = vset.pattern.permute.xlu0 0
        %252 = vperm.xlu0 %251, %v199
        %v253 = vpop.permute.xlu0 %252
        %256 = vset.pattern.permute.xlu0 0
        %257 = vperm.xlu0 %256, %v200
        %v258 = vpop.permute.xlu0 %257
        %261 = vset.pattern.permute.xlu0 0
        %262 = vperm.xlu0 %261, %v201
        %v263 = vpop.permute.xlu0 %262
        %266 = vset.pattern.permute.xlu0 0
        %267 = vperm.xlu0 %266, %v202
        %v268 = vpop.permute.xlu0 %267
        %271 = vset.pattern.permute.xlu0 0
        %272 = vperm.xlu0 %271, %v203
        %v273 = vpop.permute.xlu0 %272
        %276 = vset.pattern.permute.xlu0 0
        %277 = vperm.xlu0 %276, %v204
        %v278 = vpop.permute.xlu0 %277
        %281 = vset.pattern.permute.xlu0 0
        %282 = vperm.xlu0 %281, %v205
        %v283 = vpop.permute.xlu0 %282
        %286 = vset.pattern.permute.xlu0 0
        %287 = vperm.xlu0 %286, %v206
        %v288 = vpop.permute.xlu0 %287
        %v290 = vperm.slane %v207, 0
        %v291 = vmul.f32 %v213, %v290
        %v292 = vmul.f32 %v218, %v290
        %v293 = vmul.f32 %v223, %v290
        %v294 = vmul.f32 %v228, %v290
        %v295 = vmul.f32 %v233, %v290
        %v296 = vmul.f32 %v238, %v290
        %v297 = vmul.f32 %v243, %v290
        %v298 = vmul.f32 %v248, %v290
        %v299 = vmul.f32 %v253, %v290
        %v300 = vmul.f32 %v258, %v290
        %v301 = vmul.f32 %v263, %v290
        %v302 = vmul.f32 %v268, %v290
        %v303 = vmul.f32 %v273, %v290
        %v304 = vmul.f32 %v278, %v290
        %v305 = vmul.f32 %v283, %v290
        %v306 = vmul.f32 %v288, %v290
        %v307 = vadd.f32 %v209, %v291
        %v308 = vadd.f32 %v209, %v292
        %v309 = vadd.f32 %v209, %v293
        %v310 = vadd.f32 %v209, %v294
        %v311 = vadd.f32 %v209, %v295
        %v312 = vadd.f32 %v209, %v296
        %v313 = vadd.f32 %v209, %v297
        %v314 = vadd.f32 %v209, %v298
        %v315 = vadd.f32 %v209, %v299
        %v316 = vadd.f32 %v209, %v300
        %v317 = vadd.f32 %v209, %v301
        %v318 = vadd.f32 %v209, %v302
        %v319 = vadd.f32 %v209, %v303
        %v320 = vadd.f32 %v209, %v304
        %v321 = vadd.f32 %v209, %v305
        %v322 = vadd.f32 %v209, %v306
        %323 = vset.pattern.permute.xlu0 1
        %324 = vperm.xlu0 %323, %v191
        %v325 = vpop.permute.xlu0 %324
        %327 = vset.pattern.permute.xlu0 1
        %328 = vperm.xlu0 %327, %v192
        %v329 = vpop.permute.xlu0 %328
        %331 = vset.pattern.permute.xlu0 1
        %332 = vperm.xlu0 %331, %v193
        %v333 = vpop.permute.xlu0 %332
        %335 = vset.pattern.permute.xlu0 1
        %336 = vperm.xlu0 %335, %v194
        %v337 = vpop.permute.xlu0 %336
        %339 = vset.pattern.permute.xlu0 1
        %340 = vperm.xlu0 %339, %v195
        %v341 = vpop.permute.xlu0 %340
        %343 = vset.pattern.permute.xlu0 1
        %344 = vperm.xlu0 %343, %v196
        %v345 = vpop.permute.xlu0 %344
        %347 = vset.pattern.permute.xlu0 1
        %348 = vperm.xlu0 %347, %v197
        %v349 = vpop.permute.xlu0 %348
        %351 = vset.pattern.permute.xlu0 1
        %352 = vperm.xlu0 %351, %v198
        %v353 = vpop.permute.xlu0 %352
        %355 = vset.pattern.permute.xlu0 1
        %356 = vperm.xlu0 %355, %v199
        %v357 = vpop.permute.xlu0 %356
        %359 = vset.pattern.permute.xlu0 1
        %360 = vperm.xlu0 %359, %v200
        %v361 = vpop.permute.xlu0 %360
        %363 = vset.pattern.permute.xlu0 1
        %364 = vperm.xlu0 %363, %v201
        %v365 = vpop.permute.xlu0 %364
        %367 = vset.pattern.permute.xlu0 1
        %368 = vperm.xlu0 %367, %v202
        %v369 = vpop.permute.xlu0 %368
        %371 = vset.pattern.permute.xlu0 1
        %372 = vperm.xlu0 %371, %v203
        %v373 = vpop.permute.xlu0 %372
        %375 = vset.pattern.permute.xlu0 1
        %376 = vperm.xlu0 %375, %v204
        %v377 = vpop.permute.xlu0 %376
        %379 = vset.pattern.permute.xlu0 1
        %380 = vperm.xlu0 %379, %v205
        %v381 = vpop.permute.xlu0 %380
        %383 = vset.pattern.permute.xlu0 1
        %384 = vperm.xlu0 %383, %v206
        %v385 = vpop.permute.xlu0 %384
        %v387 = vperm.slane %v207, 1
        %v388 = vmul.f32 %v325, %v387
        %v389 = vmul.f32 %v329, %v387
        %v390 = vmul.f32 %v333, %v387
        %v391 = vmul.f32 %v337, %v387
        %v392 = vmul.f32 %v341, %v387
        %v393 = vmul.f32 %v345, %v387
        %v394 = vmul.f32 %v349, %v387
        %v395 = vmul.f32 %v353, %v387
        %v396 = vmul.f32 %v357, %v387
        %v397 = vmul.f32 %v361, %v387
        %v398 = vmul.f32 %v365, %v387
        %v399 = vmul.f32 %v369, %v387
        %v400 = vmul.f32 %v373, %v387
        %v401 = vmul.f32 %v377, %v387
        %v402 = vmul.f32 %v381, %v387
        %v403 = vmul.f32 %v385, %v387
        %v404 = vadd.f32 %v307, %v388
        %v405 = vadd.f32 %v308, %v389
        %v406 = vadd.f32 %v309, %v390
        %v407 = vadd.f32 %v310, %v391
        %v408 = vadd.f32 %v311, %v392
        %v409 = vadd.f32 %v312, %v393
        %v410 = vadd.f32 %v313, %v394
        %v411 = vadd.f32 %v314, %v395
        %v412 = vadd.f32 %v315, %v396
        %v413 = vadd.f32 %v316, %v397
        %v414 = vadd.f32 %v317, %v398
        %v415 = vadd.f32 %v318, %v399
        %v416 = vadd.f32 %v319, %v400
        %v417 = vadd.f32 %v320, %v401
        %v418 = vadd.f32 %v321, %v402
        %v419 = vadd.f32 %v322, %v403
        %420 = vset.pattern.permute.xlu0 2
        %421 = vperm.xlu0 %420, %v191
        %v422 = vpop.permute.xlu0 %421
        %424 = vset.pattern.permute.xlu0 2
        %425 = vperm.xlu0 %424, %v192
        %v426 = vpop.permute.xlu0 %425
        %428 = vset.pattern.permute.xlu0 2
        %429 = vperm.xlu0 %428, %v193
        %v430 = vpop.permute.xlu0 %429
        %432 = vset.pattern.permute.xlu0 2
        %433 = vperm.xlu0 %432, %v194
        %v434 = vpop.permute.xlu0 %433
        %436 = vset.pattern.permute.xlu0 2
        %437 = vperm.xlu0 %436, %v195
        %v438 = vpop.permute.xlu0 %437
        %440 = vset.pattern.permute.xlu0 2
        %441 = vperm.xlu0 %440, %v196
        %v442 = vpop.permute.xlu0 %441
        %444 = vset.pattern.permute.xlu0 2
        %445 = vperm.xlu0 %444, %v197
        %v446 = vpop.permute.xlu0 %445
        %448 = vset.pattern.permute.xlu0 2
        %449 = vperm.xlu0 %448, %v198
        %v450 = vpop.permute.xlu0 %449
        %452 = vset.pattern.permute.xlu0 2
        %453 = vperm.xlu0 %452, %v199
        %v454 = vpop.permute.xlu0 %453
        %456 = vset.pattern.permute.xlu0 2
        %457 = vperm.xlu0 %456, %v200
        %v458 = vpop.permute.xlu0 %457
        %460 = vset.pattern.permute.xlu0 2
        %461 = vperm.xlu0 %460, %v201
        %v462 = vpop.permute.xlu0 %461
        %464 = vset.pattern.permute.xlu0 2
        %465 = vperm.xlu0 %464, %v202
        %v466 = vpop.permute.xlu0 %465
        %468 = vset.pattern.permute.xlu0 2
        %469 = vperm.xlu0 %468, %v203
        %v470 = vpop.permute.xlu0 %469
        %472 = vset.pattern.permute.xlu0 2
        %473 = vperm.xlu0 %472, %v204
        %v474 = vpop.permute.xlu0 %473
        %476 = vset.pattern.permute.xlu0 2
        %477 = vperm.xlu0 %476, %v205
        %v478 = vpop.permute.xlu0 %477
        %480 = vset.pattern.permute.xlu0 2
        %481 = vperm.xlu0 %480, %v206
        %v482 = vpop.permute.xlu0 %481
        %v484 = vperm.slane %v207, 2
        %v485 = vmul.f32 %v422, %v484
        %v486 = vmul.f32 %v426, %v484
        %v487 = vmul.f32 %v430, %v484
        %v488 = vmul.f32 %v434, %v484
        %v489 = vmul.f32 %v438, %v484
        %v490 = vmul.f32 %v442, %v484
        %v491 = vmul.f32 %v446, %v484
        %v492 = vmul.f32 %v450, %v484
        %v493 = vmul.f32 %v454, %v484
        %v494 = vmul.f32 %v458, %v484
        %v495 = vmul.f32 %v462, %v484
        %v496 = vmul.f32 %v466, %v484
        %v497 = vmul.f32 %v470, %v484
        %v498 = vmul.f32 %v474, %v484
        %v499 = vmul.f32 %v478, %v484
        %v500 = vmul.f32 %v482, %v484
        %v501 = vadd.f32 %v404, %v485
        %v502 = vadd.f32 %v405, %v486
        %v503 = vadd.f32 %v406, %v487
        %v504 = vadd.f32 %v407, %v488
        %v505 = vadd.f32 %v408, %v489
        %v506 = vadd.f32 %v409, %v490
        %v507 = vadd.f32 %v410, %v491
        %v508 = vadd.f32 %v411, %v492
        %v509 = vadd.f32 %v412, %v493
        %v510 = vadd.f32 %v413, %v494
        %v511 = vadd.f32 %v414, %v495
        %v512 = vadd.f32 %v415, %v496
        %v513 = vadd.f32 %v416, %v497
        %v514 = vadd.f32 %v417, %v498
        %v515 = vadd.f32 %v418, %v499
        %v516 = vadd.f32 %v419, %v500
        %517 = vset.pattern.permute.xlu0 3
        %518 = vperm.xlu0 %517, %v191
        %v519 = vpop.permute.xlu0 %518
        %521 = vset.pattern.permute.xlu0 3
        %522 = vperm.xlu0 %521, %v192
        %v523 = vpop.permute.xlu0 %522
        %525 = vset.pattern.permute.xlu0 3
        %526 = vperm.xlu0 %525, %v193
        %v527 = vpop.permute.xlu0 %526
        %529 = vset.pattern.permute.xlu0 3
        %530 = vperm.xlu0 %529, %v194
        %v531 = vpop.permute.xlu0 %530
        %533 = vset.pattern.permute.xlu0 3
        %534 = vperm.xlu0 %533, %v195
        %v535 = vpop.permute.xlu0 %534
        %537 = vset.pattern.permute.xlu0 3
        %538 = vperm.xlu0 %537, %v196
        %v539 = vpop.permute.xlu0 %538
        %541 = vset.pattern.permute.xlu0 3
        %542 = vperm.xlu0 %541, %v197
        %v543 = vpop.permute.xlu0 %542
        %545 = vset.pattern.permute.xlu0 3
        %546 = vperm.xlu0 %545, %v198
        %v547 = vpop.permute.xlu0 %546
        %549 = vset.pattern.permute.xlu0 3
        %550 = vperm.xlu0 %549, %v199
        %v551 = vpop.permute.xlu0 %550
        %553 = vset.pattern.permute.xlu0 3
        %554 = vperm.xlu0 %553, %v200
        %v555 = vpop.permute.xlu0 %554
        %557 = vset.pattern.permute.xlu0 3
        %558 = vperm.xlu0 %557, %v201
        %v559 = vpop.permute.xlu0 %558
        %561 = vset.pattern.permute.xlu0 3
        %562 = vperm.xlu0 %561, %v202
        %v563 = vpop.permute.xlu0 %562
        %565 = vset.pattern.permute.xlu0 3
        %566 = vperm.xlu0 %565, %v203
        %v567 = vpop.permute.xlu0 %566
        %569 = vset.pattern.permute.xlu0 3
        %570 = vperm.xlu0 %569, %v204
        %v571 = vpop.permute.xlu0 %570
        %573 = vset.pattern.permute.xlu0 3
        %574 = vperm.xlu0 %573, %v205
        %v575 = vpop.permute.xlu0 %574
        %577 = vset.pattern.permute.xlu0 3
        %578 = vperm.xlu0 %577, %v206
        %v579 = vpop.permute.xlu0 %578
        %v581 = vperm.slane %v207, 3
        %v582 = vmul.f32 %v519, %v581
        %v583 = vmul.f32 %v523, %v581
        %v584 = vmul.f32 %v527, %v581
        %v585 = vmul.f32 %v531, %v581
        %v586 = vmul.f32 %v535, %v581
        %v587 = vmul.f32 %v539, %v581
        %v588 = vmul.f32 %v543, %v581
        %v589 = vmul.f32 %v547, %v581
        %v590 = vmul.f32 %v551, %v581
        %v591 = vmul.f32 %v555, %v581
        %v592 = vmul.f32 %v559, %v581
        %v593 = vmul.f32 %v563, %v581
        %v594 = vmul.f32 %v567, %v581
        %v595 = vmul.f32 %v571, %v581
        %v596 = vmul.f32 %v575, %v581
        %v597 = vmul.f32 %v579, %v581
        %v598 = vadd.f32 %v501, %v582
        %v599 = vadd.f32 %v502, %v583
        %v600 = vadd.f32 %v503, %v584
        %v601 = vadd.f32 %v504, %v585
        %v602 = vadd.f32 %v505, %v586
        %v603 = vadd.f32 %v506, %v587
        %v604 = vadd.f32 %v507, %v588
        %v605 = vadd.f32 %v508, %v589
        %v606 = vadd.f32 %v509, %v590
        %v607 = vadd.f32 %v510, %v591
        %v608 = vadd.f32 %v511, %v592
        %v609 = vadd.f32 %v512, %v593
        %v610 = vadd.f32 %v513, %v594
        %v611 = vadd.f32 %v514, %v595
        %v612 = vadd.f32 %v515, %v596
        %v613 = vadd.f32 %v516, %v597
        %614 = vset.pattern.permute.xlu0 4
        %615 = vperm.xlu0 %614, %v191
        %v616 = vpop.permute.xlu0 %615
        %618 = vset.pattern.permute.xlu0 4
        %619 = vperm.xlu0 %618, %v192
        %v620 = vpop.permute.xlu0 %619
        %622 = vset.pattern.permute.xlu0 4
        %623 = vperm.xlu0 %622, %v193
        %v624 = vpop.permute.xlu0 %623
        %626 = vset.pattern.permute.xlu0 4
        %627 = vperm.xlu0 %626, %v194
        %v628 = vpop.permute.xlu0 %627
        %630 = vset.pattern.permute.xlu0 4
        %631 = vperm.xlu0 %630, %v195
        %v632 = vpop.permute.xlu0 %631
        %634 = vset.pattern.permute.xlu0 4
        %635 = vperm.xlu0 %634, %v196
        %v636 = vpop.permute.xlu0 %635
        %638 = vset.pattern.permute.xlu0 4
        %639 = vperm.xlu0 %638, %v197
        %v640 = vpop.permute.xlu0 %639
        %642 = vset.pattern.permute.xlu0 4
        %643 = vperm.xlu0 %642, %v198
        %v644 = vpop.permute.xlu0 %643
        %646 = vset.pattern.permute.xlu0 4
        %647 = vperm.xlu0 %646, %v199
        %v648 = vpop.permute.xlu0 %647
        %650 = vset.pattern.permute.xlu0 4
        %651 = vperm.xlu0 %650, %v200
        %v652 = vpop.permute.xlu0 %651
        %654 = vset.pattern.permute.xlu0 4
        %655 = vperm.xlu0 %654, %v201
        %v656 = vpop.permute.xlu0 %655
        %658 = vset.pattern.permute.xlu0 4
        %659 = vperm.xlu0 %658, %v202
        %v660 = vpop.permute.xlu0 %659
        %662 = vset.pattern.permute.xlu0 4
        %663 = vperm.xlu0 %662, %v203
        %v664 = vpop.permute.xlu0 %663
        %666 = vset.pattern.permute.xlu0 4
        %667 = vperm.xlu0 %666, %v204
        %v668 = vpop.permute.xlu0 %667
        %670 = vset.pattern.permute.xlu0 4
        %671 = vperm.xlu0 %670, %v205
        %v672 = vpop.permute.xlu0 %671
        %674 = vset.pattern.permute.xlu0 4
        %675 = vperm.xlu0 %674, %v206
        %v676 = vpop.permute.xlu0 %675
        %v678 = vperm.slane %v207, 4
        %v679 = vmul.f32 %v616, %v678
        %v680 = vmul.f32 %v620, %v678
        %v681 = vmul.f32 %v624, %v678
        %v682 = vmul.f32 %v628, %v678
        %v683 = vmul.f32 %v632, %v678
        %v684 = vmul.f32 %v636, %v678
        %v685 = vmul.f32 %v640, %v678
        %v686 = vmul.f32 %v644, %v678
        %v687 = vmul.f32 %v648, %v678
        %v688 = vmul.f32 %v652, %v678
        %v689 = vmul.f32 %v656, %v678
        %v690 = vmul.f32 %v660, %v678
        %v691 = vmul.f32 %v664, %v678
        %v692 = vmul.f32 %v668, %v678
        %v693 = vmul.f32 %v672, %v678
        %v694 = vmul.f32 %v676, %v678
        %v695 = vadd.f32 %v598, %v679
        %v696 = vadd.f32 %v599, %v680
        %v697 = vadd.f32 %v600, %v681
        %v698 = vadd.f32 %v601, %v682
        %v699 = vadd.f32 %v602, %v683
        %v700 = vadd.f32 %v603, %v684
        %v701 = vadd.f32 %v604, %v685
        %v702 = vadd.f32 %v605, %v686
        %v703 = vadd.f32 %v606, %v687
        %v704 = vadd.f32 %v607, %v688
        %v705 = vadd.f32 %v608, %v689
        %v706 = vadd.f32 %v609, %v690
        %v707 = vadd.f32 %v610, %v691
        %v708 = vadd.f32 %v611, %v692
        %v709 = vadd.f32 %v612, %v693
        %v710 = vadd.f32 %v613, %v694
        %v711 = vmax.f32 %v695, 0.0
        %v712 = vmax.f32 %v696, 0.0
        %v713 = vmax.f32 %v697, 0.0
        %v714 = vmax.f32 %v698, 0.0
        %v715 = vmax.f32 %v699, 0.0
        %v716 = vmax.f32 %v700, 0.0
        %v717 = vmax.f32 %v701, 0.0
        %v718 = vmax.f32 %v702, 0.0
        %v719 = vmax.f32 %v703, 0.0
        %v720 = vmax.f32 %v704, 0.0
        %v721 = vmax.f32 %v705, 0.0
        %v722 = vmax.f32 %v706, 0.0
        %v723 = vmax.f32 %v707, 0.0
        %v724 = vmax.f32 %v708, 0.0
        %v725 = vmax.f32 %v709, 0.0
        %v726 = vmax.f32 %v710, 0.0
        %v727 = vpack.c.bf16 %v712, %v711
        %v728 = vpack.c.bf16 %v714, %v713
        %v729 = vpack.c.bf16 %v716, %v715
        %v730 = vpack.c.bf16 %v718, %v717
        %v731 = vpack.c.bf16 %v720, %v719
        %v732 = vpack.c.bf16 %v722, %v721
        %v733 = vpack.c.bf16 %v724, %v723
        %v734 = vpack.c.bf16 %v726, %v725
        %v735 = vld [vmem:[%s2 + $0x9] sm:$0x1]
        %v736 = vld [vmem:[%s2 + $0xa] sm:$0x1]
        %v737 = vld [vmem:[#allocation2] sm:$0xf]
        %v738 = vld [vmem:[#allocation2 + $0x4] sm:$0xf]
        %v739 = vld [vmem:[#allocation2 + $0x8] sm:$0xf]
        %v740 = vld [vmem:[#allocation2 + $0xc] sm:$0xf]
        %v741 = vld [vmem:[#allocation2 + $0x10] sm:$0xf]
        %v742 = vld [vmem:[#allocation2 + $0x14] sm:$0xf]
        %v743 = vld [vmem:[#allocation2 + $0x18] sm:$0xf]
        %v744 = vld [vmem:[#allocation2 + $0x1c] sm:$0xf]
        %v745 = vld [vmem:[#allocation2 + $0x20] sm:$0xf]
        %v746 = vld [vmem:[#allocation2 + $0x24] sm:$0xf]
        %v747 = vld [vmem:[#allocation2 + $0x28] sm:$0xf]
        %v748 = vld [vmem:[#allocation2 + $0x2c] sm:$0xf]
        %v749 = vld [vmem:[#allocation2 + $0x30] sm:$0xf]
        %v750 = vld [vmem:[#allocation2 + $0x34] sm:$0xf]
        %v751 = vld [vmem:[#allocation2 + $0x38] sm:$0xf]
        %v752 = vld [vmem:[#allocation2 + $0x3c] sm:$0xf]
        %v753 = vperm.slane %v735, 0
        %v770 = vunpack.c.l.b16 %v737
        %v771 = vunpack.c.l.b16 %v738
        %v772 = vunpack.c.l.b16 %v739
        %v773 = vunpack.c.l.b16 %v740
        %v774 = vunpack.c.l.b16 %v741
        %v775 = vunpack.c.l.b16 %v742
        %v776 = vunpack.c.l.b16 %v743
        %v777 = vunpack.c.l.b16 %v744
        %v778 = vunpack.c.l.b16 %v745
        %v779 = vunpack.c.l.b16 %v746
        %v780 = vunpack.c.l.b16 %v747
        %v781 = vunpack.c.l.b16 %v748
        %v782 = vunpack.c.l.b16 %v749
        %v783 = vunpack.c.l.b16 %v750
        %v784 = vunpack.c.l.b16 %v751
        %v785 = vunpack.c.l.b16 %v752
        %v786 = vpack.c.b16 %v771, %v770
        %v787 = vpack.c.b16 %v773, %v772
        %v788 = vpack.c.b16 %v775, %v774
        %v789 = vpack.c.b16 %v777, %v776
        %v790 = vpack.c.b16 %v779, %v778
        %v791 = vpack.c.b16 %v781, %v780
        %v792 = vpack.c.b16 %v783, %v782
        %v793 = vpack.c.b16 %v785, %v784
        %802 = vmatpush.bf16.msra.mxu0 %v793
        %803 = vmatpush.bf16.msra.mxu0 %v792
        %804 = vmatpush.bf16.msra.mxu0 %v791
        %805 = vmatpush.bf16.msra.mxu0 %v790
        %806 = vmatpush.bf16.msra.mxu0 %v789
        %807 = vmatpush.bf16.msra.mxu0 %v788
        %808 = vmatpush.bf16.msra.mxu0 %v787
        %809 = vmatpush.bf16.msra.mxu0 %v786
        %810 = vmatmul.bf16.gmra.mxu0 %v727
        %v811 = vpop.f32.mrf.mxu0
        %v812 = vadd.f32 %v753, %v811
        %v813 = vpop.f32.mrf.mxu0
        %v814 = vadd.f32 %v753, %v813
        %815 = vmatmul.bf16.gmra.mxu0 %v728
        %v816 = vpop.f32.mrf.mxu0
        %v817 = vadd.f32 %v753, %v816
        %v818 = vpop.f32.mrf.mxu0
        %v819 = vadd.f32 %v753, %v818
        %820 = vmatmul.bf16.gmra.mxu0 %v729
        %v821 = vpop.f32.mrf.mxu0
        %v822 = vadd.f32 %v753, %v821
        %v823 = vpop.f32.mrf.mxu0
        %v824 = vadd.f32 %v753, %v823
        %825 = vmatmul.bf16.gmra.mxu0 %v730
        %v826 = vpop.f32.mrf.mxu0
        %v827 = vadd.f32 %v753, %v826
        %v828 = vpop.f32.mrf.mxu0
        %v829 = vadd.f32 %v753, %v828
        %830 = vmatmul.bf16.gmra.mxu0 %v731
        %v831 = vpop.f32.mrf.mxu0
        %v832 = vadd.f32 %v753, %v831
        %v833 = vpop.f32.mrf.mxu0
        %v834 = vadd.f32 %v753, %v833
        %835 = vmatmul.bf16.gmra.mxu0 %v732
        %v836 = vpop.f32.mrf.mxu0
        %v837 = vadd.f32 %v753, %v836
        %v838 = vpop.f32.mrf.mxu0
        %v839 = vadd.f32 %v753, %v838
        %840 = vmatmul.bf16.gmra.mxu0 %v733
        %v841 = vpop.f32.mrf.mxu0
        %v842 = vadd.f32 %v753, %v841
        %v843 = vpop.f32.mrf.mxu0
        %v844 = vadd.f32 %v753, %v843
        %845 = vmatmul.bf16.gmra.mxu0 %v734
        %v846 = vpop.f32.mrf.mxu0
        %v847 = vadd.f32 %v753, %v846
        %v848 = vpop.f32.mrf.mxu0
        %v849 = vadd.f32 %v753, %v848
        %850 = vdwg.mxu0
        %v851 = vmax.f32 %v812, 0.0
        %v852 = vmax.f32 %v814, 0.0
        %v853 = vmax.f32 %v817, 0.0
        %v854 = vmax.f32 %v819, 0.0
        %v855 = vmax.f32 %v822, 0.0
        %v856 = vmax.f32 %v824, 0.0
        %v857 = vmax.f32 %v827, 0.0
        %v858 = vmax.f32 %v829, 0.0
        %v859 = vmax.f32 %v832, 0.0
        %v860 = vmax.f32 %v834, 0.0
        %v861 = vmax.f32 %v837, 0.0
        %v862 = vmax.f32 %v839, 0.0
        %v863 = vmax.f32 %v842, 0.0
        %v864 = vmax.f32 %v844, 0.0
        %v865 = vmax.f32 %v847, 0.0
        %v866 = vmax.f32 %v849, 0.0
        %v867 = vpack.c.bf16 %v852, %v851
        %v868 = vpack.c.bf16 %v854, %v853
        %v869 = vpack.c.bf16 %v856, %v855
        %v870 = vpack.c.bf16 %v858, %v857
        %v871 = vpack.c.bf16 %v860, %v859
        %v872 = vpack.c.bf16 %v862, %v861
        %v873 = vpack.c.bf16 %v864, %v863
        %v874 = vpack.c.bf16 %v866, %v865
        %v875 = vld [vmem:[#allocation2 + $0x40] sm:$0xf]
        %v876 = vld [vmem:[#allocation2 + $0x44] sm:$0xf]
        %v877 = vld [vmem:[#allocation2 + $0x48] sm:$0xf]
        %v878 = vld [vmem:[#allocation2 + $0x4c] sm:$0xf]
        %v879 = vld [vmem:[#allocation2 + $0x50] sm:$0xf]
        %v880 = vld [vmem:[#allocation2 + $0x54] sm:$0xf]
        %v881 = vld [vmem:[#allocation2 + $0x58] sm:$0xf]
        %v882 = vld [vmem:[#allocation2 + $0x5c] sm:$0xf]
        %v883 = vld [vmem:[#allocation2 + $0x60] sm:$0xf]
        %v884 = vld [vmem:[#allocation2 + $0x64] sm:$0xf]
        %v885 = vld [vmem:[#allocation2 + $0x68] sm:$0xf]
        %v886 = vld [vmem:[#allocation2 + $0x6c] sm:$0xf]
        %v887 = vld [vmem:[#allocation2 + $0x70] sm:$0xf]
        %v888 = vld [vmem:[#allocation2 + $0x74] sm:$0xf]
        %v889 = vld [vmem:[#allocation2 + $0x78] sm:$0xf]
        %v890 = vld [vmem:[#allocation2 + $0x7c] sm:$0xf]
        %v891 = vperm.slane %v736, 0
        %v908 = vunpack.c.l.b16 %v875
        %v909 = vunpack.c.l.b16 %v876
        %v910 = vunpack.c.l.b16 %v877
        %v911 = vunpack.c.l.b16 %v878
        %v912 = vunpack.c.l.b16 %v879
        %v913 = vunpack.c.l.b16 %v880
        %v914 = vunpack.c.l.b16 %v881
        %v915 = vunpack.c.l.b16 %v882
        %v916 = vunpack.c.l.b16 %v883
        %v917 = vunpack.c.l.b16 %v884
        %v918 = vunpack.c.l.b16 %v885
        %v919 = vunpack.c.l.b16 %v886
        %v920 = vunpack.c.l.b16 %v887
        %v921 = vunpack.c.l.b16 %v888
        %v922 = vunpack.c.l.b16 %v889
        %v923 = vunpack.c.l.b16 %v890
        %v924 = vpack.c.b16 %v909, %v908
        %v925 = vpack.c.b16 %v911, %v910
        %v926 = vpack.c.b16 %v913, %v912
        %v927 = vpack.c.b16 %v915, %v914
        %v928 = vpack.c.b16 %v917, %v916
        %v929 = vpack.c.b16 %v919, %v918
        %v930 = vpack.c.b16 %v921, %v920
        %v931 = vpack.c.b16 %v923, %v922
        %940 = vmatpush.bf16.msra.mxu0 %v931
        %941 = vmatpush.bf16.msra.mxu0 %v930
        %942 = vmatpush.bf16.msra.mxu0 %v929
        %943 = vmatpush.bf16.msra.mxu0 %v928
        %944 = vmatpush.bf16.msra.mxu0 %v927
        %945 = vmatpush.bf16.msra.mxu0 %v926
        %946 = vmatpush.bf16.msra.mxu0 %v925
        %947 = vmatpush.bf16.msra.mxu0 %v924
        %948 = vmatmul.bf16.gmra.mxu0 %v727
        %v949 = vpop.f32.mrf.mxu0
        %v950 = vadd.f32 %v891, %v949
        %v951 = vpop.f32.mrf.mxu0
        %v952 = vadd.f32 %v891, %v951
        %953 = vmatmul.bf16.gmra.mxu0 %v728
        %v954 = vpop.f32.mrf.mxu0
        %v955 = vadd.f32 %v891, %v954
        %v956 = vpop.f32.mrf.mxu0
        %v957 = vadd.f32 %v891, %v956
        %958 = vmatmul.bf16.gmra.mxu0 %v729
        %v959 = vpop.f32.mrf.mxu0
        %v960 = vadd.f32 %v891, %v959
        %v961 = vpop.f32.mrf.mxu0
        %v962 = vadd.f32 %v891, %v961
        %963 = vmatmul.bf16.gmra.mxu0 %v730
        %v964 = vpop.f32.mrf.mxu0
        %v965 = vadd.f32 %v891, %v964
        %v966 = vpop.f32.mrf.mxu0
        %v967 = vadd.f32 %v891, %v966
        %968 = vmatmul.bf16.gmra.mxu0 %v731
        %v969 = vpop.f32.mrf.mxu0
        %v970 = vadd.f32 %v891, %v969
        %v971 = vpop.f32.mrf.mxu0
        %v972 = vadd.f32 %v891, %v971
        %973 = vmatmul.bf16.gmra.mxu0 %v732
        %v974 = vpop.f32.mrf.mxu0
        %v975 = vadd.f32 %v891, %v974
        %v976 = vpop.f32.mrf.mxu0
        %v977 = vadd.f32 %v891, %v976
        %978 = vmatmul.bf16.gmra.mxu0 %v733
        %v979 = vpop.f32.mrf.mxu0
        %v980 = vadd.f32 %v891, %v979
        %v981 = vpop.f32.mrf.mxu0
        %v982 = vadd.f32 %v891, %v981
        %983 = vmatmul.bf16.gmra.mxu0 %v734
        %v984 = vpop.f32.mrf.mxu0
        %v985 = vadd.f32 %v891, %v984
        %v986 = vpop.f32.mrf.mxu0
        %v987 = vadd.f32 %v891, %v986
        %988 = vdwg.mxu0
        %v989 = vmax.f32 %v950, 0.0
        %v990 = vmax.f32 %v952, 0.0
        %v991 = vmax.f32 %v955, 0.0
        %v992 = vmax.f32 %v957, 0.0
        %v993 = vmax.f32 %v960, 0.0
        %v994 = vmax.f32 %v962, 0.0
        %v995 = vmax.f32 %v965, 0.0
        %v996 = vmax.f32 %v967, 0.0
        %v997 = vmax.f32 %v970, 0.0
        %v998 = vmax.f32 %v972, 0.0
        %v999 = vmax.f32 %v975, 0.0
        %v1000 = vmax.f32 %v977, 0.0
        %v1001 = vmax.f32 %v980, 0.0
        %v1002 = vmax.f32 %v982, 0.0
        %v1003 = vmax.f32 %v985, 0.0
        %v1004 = vmax.f32 %v987, 0.0
        %v1005 = vpack.c.bf16 %v990, %v989
        %v1006 = vpack.c.bf16 %v992, %v991
        %v1007 = vpack.c.bf16 %v994, %v993
        %v1008 = vpack.c.bf16 %v996, %v995
        %v1009 = vpack.c.bf16 %v998, %v997
        %v1010 = vpack.c.bf16 %v1000, %v999
        %v1011 = vpack.c.bf16 %v1002, %v1001
        %v1012 = vpack.c.bf16 %v1004, %v1003
        %v1013 = vld [vmem:[%s2 + $0xb] sm:$0x1]
        %v1014 = vld [vmem:[#allocation2 + $0x80] sm:$0xf]
        %v1015 = vld [vmem:[#allocation2 + $0x84] sm:$0xf]
        %v1016 = vld [vmem:[#allocation2 + $0x88] sm:$0xf]
        %v1017 = vld [vmem:[#allocation2 + $0x8c] sm:$0xf]
        %v1018 = vld [vmem:[#allocation2 + $0x90] sm:$0xf]
        %v1019 = vld [vmem:[#allocation2 + $0x94] sm:$0xf]
        %v1020 = vld [vmem:[#allocation2 + $0x98] sm:$0xf]
        %v1021 = vld [vmem:[#allocation2 + $0x9c] sm:$0xf]
        %v1022 = vld [vmem:[#allocation2 + $0xa0] sm:$0xf]
        %v1023 = vld [vmem:[#allocation2 + $0xa4] sm:$0xf]
        %v1024 = vld [vmem:[#allocation2 + $0xa8] sm:$0xf]
        %v1025 = vld [vmem:[#allocation2 + $0xac] sm:$0xf]
        %v1026 = vld [vmem:[#allocation2 + $0xb0] sm:$0xf]
        %v1027 = vld [vmem:[#allocation2 + $0xb4] sm:$0xf]
        %v1028 = vld [vmem:[#allocation2 + $0xb8] sm:$0xf]
        %v1029 = vld [vmem:[#allocation2 + $0xbc] sm:$0xf]
        %v1030 = vld [vmem:[#allocation2 + $0xc0] sm:$0xf]
        %v1031 = vld [vmem:[#allocation2 + $0xc4] sm:$0xf]
        %v1032 = vld [vmem:[#allocation2 + $0xc8] sm:$0xf]
        %v1033 = vld [vmem:[#allocation2 + $0xcc] sm:$0xf]
        %v1034 = vld [vmem:[#allocation2 + $0xd0] sm:$0xf]
        %v1035 = vld [vmem:[#allocation2 + $0xd4] sm:$0xf]
        %v1036 = vld [vmem:[#allocation2 + $0xd8] sm:$0xf]
        %v1037 = vld [vmem:[#allocation2 + $0xdc] sm:$0xf]
        %v1038 = vld [vmem:[#allocation2 + $0xe0] sm:$0xf]
        %v1039 = vld [vmem:[#allocation2 + $0xe4] sm:$0xf]
        %v1040 = vld [vmem:[#allocation2 + $0xe8] sm:$0xf]
        %v1041 = vld [vmem:[#allocation2 + $0xec] sm:$0xf]
        %v1042 = vld [vmem:[#allocation2 + $0xf0] sm:$0xf]
        %v1043 = vld [vmem:[#allocation2 + $0xf4] sm:$0xf]
        %v1044 = vld [vmem:[#allocation2 + $0xf8] sm:$0xf]
        %v1045 = vld [vmem:[#allocation2 + $0xfc] sm:$0xf]
        %v1062 = vunpack.c.l.b16 %v1030
        %v1063 = vunpack.c.l.b16 %v1031
        %v1064 = vunpack.c.l.b16 %v1032
        %v1065 = vunpack.c.l.b16 %v1033
        %v1066 = vunpack.c.l.b16 %v1034
        %v1067 = vunpack.c.l.b16 %v1035
        %v1068 = vunpack.c.l.b16 %v1036
        %v1069 = vunpack.c.l.b16 %v1037
        %v1070 = vunpack.c.l.b16 %v1038
        %v1071 = vunpack.c.l.b16 %v1039
        %v1072 = vunpack.c.l.b16 %v1040
        %v1073 = vunpack.c.l.b16 %v1041
        %v1074 = vunpack.c.l.b16 %v1042
        %v1075 = vunpack.c.l.b16 %v1043
        %v1076 = vunpack.c.l.b16 %v1044
        %v1077 = vunpack.c.l.b16 %v1045
        %v1078 = vpack.c.b16 %v1063, %v1062
        %v1079 = vpack.c.b16 %v1065, %v1064
        %v1080 = vpack.c.b16 %v1067, %v1066
        %v1081 = vpack.c.b16 %v1069, %v1068
        %v1082 = vpack.c.b16 %v1071, %v1070
        %v1083 = vpack.c.b16 %v1073, %v1072
        %v1084 = vpack.c.b16 %v1075, %v1074
        %v1085 = vpack.c.b16 %v1077, %v1076
        %1094 = vmatpush.bf16.msra.mxu0 %v1085
        %1095 = vmatpush.bf16.msra.mxu0 %v1084
        %1096 = vmatpush.bf16.msra.mxu0 %v1083
        %1097 = vmatpush.bf16.msra.mxu0 %v1082
        %1098 = vmatpush.bf16.msra.mxu0 %v1081
        %1099 = vmatpush.bf16.msra.mxu0 %v1080
        %1100 = vmatpush.bf16.msra.mxu0 %v1079
        %1101 = vmatpush.bf16.msra.mxu0 %v1078
        %1102 = vmatmul.bf16.gmra.mxu0 %v1005
        %v1103 = vpop.f32.mrf.mxu0
        %v1104 = vadd.f32 0.0, %v1103
        %v1105 = vpop.f32.mrf.mxu0
        %v1106 = vadd.f32 0.0, %v1105
        %1107 = vmatmul.bf16.gmra.mxu0 %v1006
        %v1108 = vpop.f32.mrf.mxu0
        %v1109 = vadd.f32 0.0, %v1108
        %v1110 = vpop.f32.mrf.mxu0
        %v1111 = vadd.f32 0.0, %v1110
        %1112 = vmatmul.bf16.gmra.mxu0 %v1007
        %v1113 = vpop.f32.mrf.mxu0
        %v1114 = vadd.f32 0.0, %v1113
        %v1115 = vpop.f32.mrf.mxu0
        %v1116 = vadd.f32 0.0, %v1115
        %1117 = vmatmul.bf16.gmra.mxu0 %v1008
        %v1118 = vpop.f32.mrf.mxu0
        %v1119 = vadd.f32 0.0, %v1118
        %v1120 = vpop.f32.mrf.mxu0
        %v1121 = vadd.f32 0.0, %v1120
        %1122 = vmatmul.bf16.gmra.mxu0 %v1009
        %v1123 = vpop.f32.mrf.mxu0
        %v1124 = vadd.f32 0.0, %v1123
        %v1125 = vpop.f32.mrf.mxu0
        %v1126 = vadd.f32 0.0, %v1125
        %1127 = vmatmul.bf16.gmra.mxu0 %v1010
        %v1128 = vpop.f32.mrf.mxu0
        %v1129 = vadd.f32 0.0, %v1128
        %v1130 = vpop.f32.mrf.mxu0
        %v1131 = vadd.f32 0.0, %v1130
        %1132 = vmatmul.bf16.gmra.mxu0 %v1011
        %v1133 = vpop.f32.mrf.mxu0
        %v1134 = vadd.f32 0.0, %v1133
        %v1135 = vpop.f32.mrf.mxu0
        %v1136 = vadd.f32 0.0, %v1135
        %1137 = vmatmul.bf16.gmra.mxu0 %v1012
        %v1138 = vpop.f32.mrf.mxu0
        %v1139 = vadd.f32 0.0, %v1138
        %v1140 = vpop.f32.mrf.mxu0
        %v1141 = vadd.f32 0.0, %v1140
        %1142 = vdwg.mxu0
        %v1159 = vunpack.c.l.b16 %v1014
        %v1160 = vunpack.c.l.b16 %v1015
        %v1161 = vunpack.c.l.b16 %v1016
        %v1162 = vunpack.c.l.b16 %v1017
        %v1163 = vunpack.c.l.b16 %v1018
        %v1164 = vunpack.c.l.b16 %v1019
        %v1165 = vunpack.c.l.b16 %v1020
        %v1166 = vunpack.c.l.b16 %v1021
        %v1167 = vunpack.c.l.b16 %v1022
        %v1168 = vunpack.c.l.b16 %v1023
        %v1169 = vunpack.c.l.b16 %v1024
        %v1170 = vunpack.c.l.b16 %v1025
        %v1171 = vunpack.c.l.b16 %v1026
        %v1172 = vunpack.c.l.b16 %v1027
        %v1173 = vunpack.c.l.b16 %v1028
        %v1174 = vunpack.c.l.b16 %v1029
        %v1175 = vpack.c.b16 %v1160, %v1159
        %v1176 = vpack.c.b16 %v1162, %v1161
        %v1177 = vpack.c.b16 %v1164, %v1163
        %v1178 = vpack.c.b16 %v1166, %v1165
        %v1179 = vpack.c.b16 %v1168, %v1167
        %v1180 = vpack.c.b16 %v1170, %v1169
        %v1181 = vpack.c.b16 %v1172, %v1171
        %v1182 = vpack.c.b16 %v1174, %v1173
        %1191 = vmatpush.bf16.msra.mxu0 %v1182
        %1192 = vmatpush.bf16.msra.mxu0 %v1181
        %1193 = vmatpush.bf16.msra.mxu0 %v1180
        %1194 = vmatpush.bf16.msra.mxu0 %v1179
        %1195 = vmatpush.bf16.msra.mxu0 %v1178
        %1196 = vmatpush.bf16.msra.mxu0 %v1177
        %1197 = vmatpush.bf16.msra.mxu0 %v1176
        %1198 = vmatpush.bf16.msra.mxu0 %v1175
        %1199 = vmatmul.bf16.gmra.mxu0 %v867
        %v1200 = vpop.f32.mrf.mxu0
        %v1201 = vadd.f32 %v1104, %v1200
        %v1202 = vpop.f32.mrf.mxu0
        %v1203 = vadd.f32 %v1106, %v1202
        %1204 = vmatmul.bf16.gmra.mxu0 %v868
        %v1205 = vpop.f32.mrf.mxu0
        %v1206 = vadd.f32 %v1109, %v1205
        %v1207 = vpop.f32.mrf.mxu0
        %v1208 = vadd.f32 %v1111, %v1207
        %1209 = vmatmul.bf16.gmra.mxu0 %v869
        %v1210 = vpop.f32.mrf.mxu0
        %v1211 = vadd.f32 %v1114, %v1210
        %v1212 = vpop.f32.mrf.mxu0
        %v1213 = vadd.f32 %v1116, %v1212
        %1214 = vmatmul.bf16.gmra.mxu0 %v870
        %v1215 = vpop.f32.mrf.mxu0
        %v1216 = vadd.f32 %v1119, %v1215
        %v1217 = vpop.f32.mrf.mxu0
        %v1218 = vadd.f32 %v1121, %v1217
        %1219 = vmatmul.bf16.gmra.mxu0 %v871
        %v1220 = vpop.f32.mrf.mxu0
        %v1221 = vadd.f32 %v1124, %v1220
        %v1222 = vpop.f32.mrf.mxu0
        %v1223 = vadd.f32 %v1126, %v1222
        %1224 = vmatmul.bf16.gmra.mxu0 %v872
        %v1225 = vpop.f32.mrf.mxu0
        %v1226 = vadd.f32 %v1129, %v1225
        %v1227 = vpop.f32.mrf.mxu0
        %v1228 = vadd.f32 %v1131, %v1227
        %1229 = vmatmul.bf16.gmra.mxu0 %v873
        %v1230 = vpop.f32.mrf.mxu0
        %v1231 = vadd.f32 %v1134, %v1230
        %v1232 = vpop.f32.mrf.mxu0
        %v1233 = vadd.f32 %v1136, %v1232
        %1234 = vmatmul.bf16.gmra.mxu0 %v874
        %v1235 = vpop.f32.mrf.mxu0
        %v1236 = vadd.f32 %v1139, %v1235
        %v1237 = vpop.f32.mrf.mxu0
        %v1238 = vadd.f32 %v1141, %v1237
        %1239 = vdwg.mxu0
        %v1240 = vperm.slane %v1013, 0
        %v1241 = vadd.f32 %v1201, %v1240
        %v1242 = vadd.f32 %v1203, %v1240
        %v1243 = vadd.f32 %v1206, %v1240
        %v1244 = vadd.f32 %v1208, %v1240
        %v1245 = vadd.f32 %v1211, %v1240
        %v1246 = vadd.f32 %v1213, %v1240
        %v1247 = vadd.f32 %v1216, %v1240
        %v1248 = vadd.f32 %v1218, %v1240
        %v1249 = vadd.f32 %v1221, %v1240
        %v1250 = vadd.f32 %v1223, %v1240
        %v1251 = vadd.f32 %v1226, %v1240
        %v1252 = vadd.f32 %v1228, %v1240
        %v1253 = vadd.f32 %v1231, %v1240
        %v1254 = vadd.f32 %v1233, %v1240
        %v1255 = vadd.f32 %v1236, %v1240
        %v1256 = vadd.f32 %v1238, %v1240
        %v1257 = vmax.f32 %v1241, 0.0
        %v1258 = vmax.f32 %v1242, 0.0
        %v1259 = vmax.f32 %v1243, 0.0
        %v1260 = vmax.f32 %v1244, 0.0
        %v1261 = vmax.f32 %v1245, 0.0
        %v1262 = vmax.f32 %v1246, 0.0
        %v1263 = vmax.f32 %v1247, 0.0
        %v1264 = vmax.f32 %v1248, 0.0
        %v1265 = vmax.f32 %v1249, 0.0
        %v1266 = vmax.f32 %v1250, 0.0
        %v1267 = vmax.f32 %v1251, 0.0
        %v1268 = vmax.f32 %v1252, 0.0
        %v1269 = vmax.f32 %v1253, 0.0
        %v1270 = vmax.f32 %v1254, 0.0
        %v1271 = vmax.f32 %v1255, 0.0
        %v1272 = vmax.f32 %v1256, 0.0
        %v1273 = vpack.c.bf16 %v1258, %v1257
        %v1274 = vpack.c.bf16 %v1260, %v1259
        %v1275 = vpack.c.bf16 %v1262, %v1261
        %v1276 = vpack.c.bf16 %v1264, %v1263
        %v1277 = vpack.c.bf16 %v1266, %v1265
        %v1278 = vpack.c.bf16 %v1268, %v1267
        %v1279 = vpack.c.bf16 %v1270, %v1269
        %v1280 = vpack.c.bf16 %v1272, %v1271
        %v1281 = vld [vmem:[%s2 + $0xc] sm:$0x1]
        %v1282 = vld [vmem:[#allocation2 + $0x100] sm:$0xf]
        %v1283 = vld [vmem:[#allocation2 + $0x104] sm:$0xf]
        %v1284 = vld [vmem:[#allocation2 + $0x108] sm:$0xf]
        %v1285 = vld [vmem:[#allocation2 + $0x10c] sm:$0xf]
        %v1286 = vld [vmem:[#allocation2 + $0x110] sm:$0xf]
        %v1287 = vld [vmem:[#allocation2 + $0x114] sm:$0xf]
        %v1288 = vld [vmem:[#allocation2 + $0x118] sm:$0xf]
        %v1289 = vld [vmem:[#allocation2 + $0x11c] sm:$0xf]
        %v1290 = vld [vmem:[#allocation2 + $0x120] sm:$0xf]
        %v1291 = vld [vmem:[#allocation2 + $0x124] sm:$0xf]
        %v1292 = vld [vmem:[#allocation2 + $0x128] sm:$0xf]
        %v1293 = vld [vmem:[#allocation2 + $0x12c] sm:$0xf]
        %v1294 = vld [vmem:[#allocation2 + $0x130] sm:$0xf]
        %v1295 = vld [vmem:[#allocation2 + $0x134] sm:$0xf]
        %v1296 = vld [vmem:[#allocation2 + $0x138] sm:$0xf]
        %v1297 = vld [vmem:[#allocation2 + $0x13c] sm:$0xf]
        %v1298 = vperm.slane %v1281, 0
        %v1315 = vunpack.c.l.b16 %v1282
        %v1316 = vunpack.c.l.b16 %v1283
        %v1317 = vunpack.c.l.b16 %v1284
        %v1318 = vunpack.c.l.b16 %v1285
        %v1319 = vunpack.c.l.b16 %v1286
        %v1320 = vunpack.c.l.b16 %v1287
        %v1321 = vunpack.c.l.b16 %v1288
        %v1322 = vunpack.c.l.b16 %v1289
        %v1323 = vunpack.c.l.b16 %v1290
        %v1324 = vunpack.c.l.b16 %v1291
        %v1325 = vunpack.c.l.b16 %v1292
        %v1326 = vunpack.c.l.b16 %v1293
        %v1327 = vunpack.c.l.b16 %v1294
        %v1328 = vunpack.c.l.b16 %v1295
        %v1329 = vunpack.c.l.b16 %v1296
        %v1330 = vunpack.c.l.b16 %v1297
        %v1331 = vpack.c.b16 %v1316, %v1315
        %v1332 = vpack.c.b16 %v1318, %v1317
        %v1333 = vpack.c.b16 %v1320, %v1319
        %v1334 = vpack.c.b16 %v1322, %v1321
        %v1335 = vpack.c.b16 %v1324, %v1323
        %v1336 = vpack.c.b16 %v1326, %v1325
        %v1337 = vpack.c.b16 %v1328, %v1327
        %v1338 = vpack.c.b16 %v1330, %v1329
        %1347 = vmatpush.bf16.msra.mxu0 %v1338
        %1348 = vmatpush.bf16.msra.mxu0 %v1337
        %1349 = vmatpush.bf16.msra.mxu0 %v1336
        %1350 = vmatpush.bf16.msra.mxu0 %v1335
        %1351 = vmatpush.bf16.msra.mxu0 %v1334
        %1352 = vmatpush.bf16.msra.mxu0 %v1333
        %1353 = vmatpush.bf16.msra.mxu0 %v1332
        %1354 = vmatpush.bf16.msra.mxu0 %v1331
        %1355 = vmatmul.bf16.gmra.mxu0 %v1273
        %v1356 = vpop.f32.mrf.mxu0
        %v1357 = vadd.f32 %v1298, %v1356
        %v1358 = vpop.f32.mrf.mxu0
        %v1359 = vadd.f32 %v1298, %v1358
        %1360 = vmatmul.bf16.gmra.mxu0 %v1274
        %v1361 = vpop.f32.mrf.mxu0
        %v1362 = vadd.f32 %v1298, %v1361
        %v1363 = vpop.f32.mrf.mxu0
        %v1364 = vadd.f32 %v1298, %v1363
        %1365 = vmatmul.bf16.gmra.mxu0 %v1275
        %v1366 = vpop.f32.mrf.mxu0
        %v1367 = vadd.f32 %v1298, %v1366
        %v1368 = vpop.f32.mrf.mxu0
        %v1369 = vadd.f32 %v1298, %v1368
        %1370 = vmatmul.bf16.gmra.mxu0 %v1276
        %v1371 = vpop.f32.mrf.mxu0
        %v1372 = vadd.f32 %v1298, %v1371
        %v1373 = vpop.f32.mrf.mxu0
        %v1374 = vadd.f32 %v1298, %v1373
        %1375 = vmatmul.bf16.gmra.mxu0 %v1277
        %v1376 = vpop.f32.mrf.mxu0
        %v1377 = vadd.f32 %v1298, %v1376
        %v1378 = vpop.f32.mrf.mxu0
        %v1379 = vadd.f32 %v1298, %v1378
        %1380 = vmatmul.bf16.gmra.mxu0 %v1278
        %v1381 = vpop.f32.mrf.mxu0
        %v1382 = vadd.f32 %v1298, %v1381
        %v1383 = vpop.f32.mrf.mxu0
        %v1384 = vadd.f32 %v1298, %v1383
        %1385 = vmatmul.bf16.gmra.mxu0 %v1279
        %v1386 = vpop.f32.mrf.mxu0
        %v1387 = vadd.f32 %v1298, %v1386
        %v1388 = vpop.f32.mrf.mxu0
        %v1389 = vadd.f32 %v1298, %v1388
        %1390 = vmatmul.bf16.gmra.mxu0 %v1280
        %v1391 = vpop.f32.mrf.mxu0
        %v1392 = vadd.f32 %v1298, %v1391
        %v1393 = vpop.f32.mrf.mxu0
        %v1394 = vadd.f32 %v1298, %v1393
        %1395 = vdwg.mxu0
        %v1396 = vpack.c.bf16 %v1357, %v1357
        %v1397 = vpack.c.bf16 %v1359, %v1359
        %v1398 = vpack.c.bf16 %v1362, %v1362
        %v1399 = vpack.c.bf16 %v1364, %v1364
        %v1400 = vpack.c.bf16 %v1367, %v1367
        %v1401 = vpack.c.bf16 %v1369, %v1369
        %v1402 = vpack.c.bf16 %v1372, %v1372
        %v1403 = vpack.c.bf16 %v1374, %v1374
        %v1404 = vpack.c.bf16 %v1377, %v1377
        %v1405 = vpack.c.bf16 %v1379, %v1379
        %v1406 = vpack.c.bf16 %v1382, %v1382
        %v1407 = vpack.c.bf16 %v1384, %v1384
        %v1408 = vpack.c.bf16 %v1387, %v1387
        %v1409 = vpack.c.bf16 %v1389, %v1389
        %v1410 = vpack.c.bf16 %v1392, %v1392
        %v1411 = vpack.c.bf16 %v1394, %v1394
        %1412 = vst [vmem:[%s189] sm:$0xf] %v1396
        %1413 = vst [vmem:[%s189 + $0x4] sm:$0xf] %v1397
        %1414 = vst [vmem:[%s189 + $0x8] sm:$0xf] %v1398
        %1415 = vst [vmem:[%s189 + $0xc] sm:$0xf] %v1399
        %1416 = vst [vmem:[%s189 + $0x10] sm:$0xf] %v1400
        %1417 = vst [vmem:[%s189 + $0x14] sm:$0xf] %v1401
        %1418 = vst [vmem:[%s189 + $0x18] sm:$0xf] %v1402
        %1419 = vst [vmem:[%s189 + $0x1c] sm:$0xf] %v1403
        %1420 = vst [vmem:[%s189 + $0x20] sm:$0xf] %v1404
        %1421 = vst [vmem:[%s189 + $0x24] sm:$0xf] %v1405
        %1422 = vst [vmem:[%s189 + $0x28] sm:$0xf] %v1406
        %1423 = vst [vmem:[%s189 + $0x2c] sm:$0xf] %v1407
        %1424 = vst [vmem:[%s189 + $0x30] sm:$0xf] %v1408
        %1425 = vst [vmem:[%s189 + $0x34] sm:$0xf] %v1409
        %1426 = vst [vmem:[%s189 + $0x38] sm:$0xf] %v1410
        %1427 = vst [vmem:[%s189 + $0x3c] sm:$0xf] %v1411
        %s1428 = smul.u32 16, %s15
        %p1429 = scmp.lt.s32.totalorder %s1428, 31
        %s1430 = scalar_select %p1429, %s1428, 31
        %s1431 = smul.addr %s1430, 4
        %s1432 = scalar_lea.vmem %s3, %s1431
        // Predicated region
        $region37: #{network_forward.1} parent=31 // pred_check
          %p1433 = pneg %p101
        $region38: #{network_forward.1} parent=31 // pred_check_branch
          %1435 = sbr.rel (%p1433) target = $region40
        $region39: #{network_forward.1} parent=31 // pred_region
          %s1436 = smul.u32 16, %s15
        $region40: #{network_forward.1} parent=31 // pred_fallthru
          _
      $region32: #{network_forward.1} parent=5 // pred_fallthru
        _
      %p1437 = scmp.le.s32.totalorder 2, %s10
      // Predicated region
      $region41: #{network_forward.1} parent=5 // pred_check
        %p1438 = pneg %p1437
      $region42: #{network_forward.1} parent=5 // pred_check_branch
        %1440 = sbr.rel (%p1438) target = $region44
      $region43: #{network_forward.1} parent=5 // pred_region
        %s1441 = ssub.s32 %s10, 2
        // Predicated region
        $region45: #{network_forward.1} parent=43 // pred_check
          %p1442 = pneg %p107
        $region46: #{network_forward.1} parent=43 // pred_check_branch
          %1444 = sbr.rel (%p1442) target = $region48
        $region47: #{network_forward.1} parent=43 // pred_region
          %s1445 = smul.u32 16, %s16
          %p1446 = scmp.lt.s32.totalorder %s1445, 31
          %s1447 = scalar_select %p1446, %s1445, 31
          %s1448 = smul.addr %s1447, 4
          %s1449 = scalar_lea.vmem %s3, %s1448
        $region48: #{network_forward.1} parent=43 // pred_fallthru
          _
      $region44: #{network_forward.1} parent=5 // pred_fallthru
        _
    $region6: #{network_forward.1} parent=1 // loop_footer
      %s14 = sadd.s32 1, %s10
    $region7: #{network_forward.1} parent=1 // loop_footer_branch
      %9 = sbr.rel target = $region3
    $region8: #{network_forward.1} parent=1 // loop_exit
      _
    %1450 = vsyncpa [#allocation3], 1
    %s1451 = scalar_lea.sflag [#allocation3], 1
    %1452 = vsyncpa %s1451, 1

</llo_original>
